<compile_context>
chip_gen: v6e
topology: v6e:2x2x1
jax: 0.10.0
libtpu: 0.0.40
codegen_flags: <defaults>
</compile_context>

<pallas_src>
import functools

import jax
import jax.numpy as jnp
from jax.experimental import pallas as pl
from jax.experimental.pallas import tpu as pltpu

_SUBLANE = 8


def _round_up(x, m):
    return (x + m - 1) // m * m


def _gcn_kernel(nbr_ref, wt_ref, b_ref, out_ref, *, inv_n):
    # nbr_ref: (TB, N, D)  neighbor embeddings for TB nodes
    # wt_ref:  (D, D)      W^T in (in, out) layout -> contract RHS dim 0
    # b_ref:   (1, D)      bias
    # out_ref: (TB, D)
    agg = jnp.sum(nbr_ref[...], axis=1)                       # (TB, D) f32
    y = jnp.dot(agg, wt_ref[...], preferred_element_type=jnp.float32)
    # Fold the 1/N mean scale after the matmul (VALU has slack; kernel is
    # DMA-bound), then bias + ReLU in f32.
    y = y * inv_n + b_ref[...]
    out_ref[...] = jnp.maximum(y, 0.0).astype(out_ref.dtype)


def gcn_layer_batched(nbr_embeds, weight, bias, *, block_b=1024):
    """Batched GCNLayer forward.

    nbr_embeds: (B, N, D) — N neighbor embeddings per node, for B nodes.
    weight:     (D, D)    — nn.Linear weight in (out, in) layout.
    bias:       (D,)
    returns     (B, D)    — relu(mean_N(nbr) @ W^T + b) per node.
    """
    b_nodes, n_nbr, d = nbr_embeds.shape
    d_out, d_in = weight.shape
    assert d_in == d and d_out == d, "GCNLayer uses a square Linear(D, D)"

    # One-time wrapper-side transpose: kernel sees W^T and contracts dim 0.
    wt = weight.T                       # (D_in, D_out)
    bias2d = bias.reshape(1, d_out)

    # Batch tile: as large as block_b allows, but keep >= 2 grid steps when
    # possible so the "parallel" axis can be split across v7x's 2 TCs.
    tb = min(block_b, _round_up(pl.cdiv(b_nodes, 2), _SUBLANE))
    tb = max(tb, _SUBLANE)
    grid = pl.cdiv(b_nodes, tb)

    # Explicit VMEM budget: double-buffered input + output tiles, resident
    # weight/bias (counted twice for safety), plus 2x headroom.
    tile_bytes = (2 * tb * n_nbr * d * 4          # input double-buffer
                  + 2 * tb * d_out * 4            # output double-buffer
                  + 2 * (d * d_out * 4 + d_out * 4))
    vmem_limit = int(min(64 * 1024 * 1024, max(8 * 1024 * 1024, 2 * tile_bytes)))

    kernel = functools.partial(_gcn_kernel, inv_n=1.0 / n_nbr)

    out = pl.pallas_call(
        kernel,
        out_shape=jax.ShapeDtypeStruct((b_nodes, d_out), jnp.float32),
        grid_spec=pltpu.PrefetchScalarGridSpec(
            num_scalar_prefetch=0,
            grid=(grid,),
            in_specs=[
                # Per-node tiles stream along the batch grid axis; the tail
                # block over-reads and its out-of-range stores are masked.
                pl.BlockSpec((tb, n_nbr, d), lambda i: (i, 0, 0)),
                # Weight / bias stay resident (same block every grid step).
                pl.BlockSpec((d, d_out), lambda i: (0, 0)),
                pl.BlockSpec((1, d_out), lambda i: (0, 0)),
            ],
            out_specs=pl.BlockSpec((tb, d_out), lambda i: (i, 0)),
        ),
        compiler_params=pltpu.CompilerParams(
            dimension_semantics=("parallel",),
            vmem_limit_bytes=vmem_limit,
        ),
    )(nbr_embeds, wt, bias2d)

    return out


def gcn_layer(nbr_embeds, weight, bias, *, use_pallas=False):
    """Module-equivalent forward: nbr_embeds (N, D) -> (1, D).

    A single node is ~1 KB of work, so by default this takes the plain-jnp
    path (a Pallas launch would be pure overhead).  Set use_pallas=True to
    route through the batched kernel (e.g. for testing the B=1 case).
    """
    if use_pallas:
        return gcn_layer_batched(nbr_embeds[None, ...], weight, bias)
    aggre = jnp.mean(nbr_embeds, axis=0, keepdims=True)
    return jax.nn.relu(aggre @ weight.T + bias)


def gcn_layer_ref(nbr_embeds, weight, bias):
    aggre = jnp.mean(nbr_embeds, axis=0).reshape(1, -1)
    return jax.nn.relu(aggre @ weight.T + bias)


if __name__ == "__main__":
    key = jax.random.PRNGKey(0)
    k1, k2, k3, k4 = jax.random.split(key, 4)

    N = 8    # number of neighbor embeddings
    D = 32   # user_ebd_size

    weight = jax.random.normal(k2, (D, D), dtype=jnp.float32) * 0.1
    bias = jax.random.normal(k3, (D,), dtype=jnp.float32) * 0.1

    # Module-equivalent single-node forward, routed through the Pallas kernel
    # to exercise the B=1 / masked-tail path.
    nbr_embeds = jax.random.normal(k1, (N, D), dtype=jnp.float32)
    out1 = jax.block_until_ready(gcn_layer(nbr_embeds, weight, bias, use_pallas=True))
    ref1 = gcn_layer_ref(nbr_embeds, weight, bias)
    assert out1.shape == (1, D)
    assert jnp.allclose(out1, ref1, atol=1e-5, rtol=1e-5), "single-node mismatch"

    # Batched Pallas path; B deliberately NOT a multiple of the tile so the
    # cdiv grid's masked tail block is exercised.
    B = 50
    nbr_batch = jax.random.normal(k4, (B, N, D), dtype=jnp.float32)
    out_b = jax.block_until_ready(gcn_layer_batched(nbr_batch, weight, bias))
    ref_b = jax.vmap(lambda x: gcn_layer_ref(x, weight, bias)[0])(nbr_batch)
    assert out_b.shape == (B, D)
    assert jnp.allclose(out_b, ref_b, atol=1e-4, rtol=1e-4), "batched mismatch"

    # Default single-node path (jnp fast path, no Pallas launch).
    out_fast = jax.block_until_ready(gcn_layer(nbr_embeds, weight, bias))
    assert jnp.allclose(out_fast, ref1, atol=1e-5, rtol=1e-5)

    print("KERNEL_OK")
</pallas_src>

<mosaic_0001>
module attributes {stable_mosaic.version = 11 : i64} {
  func.func @_gcn_kernel(%arg0: i32, %arg1: memref<8x8x32xf32, #tpu.memory_space<vmem>>, %arg2: memref<32x32xf32, #tpu.memory_space<vmem>>, %arg3: memref<1x32xf32, #tpu.memory_space<vmem>>, %arg4: memref<8x32xf32, #tpu.memory_space<vmem>>) attributes {dimension_semantics = [#tpu.dimension_semantics<parallel>], iteration_bounds = array<i64: 1>, scalar_prefetch = 0 : i64, scratch_operands = 0 : i64, tpu.core_type = #tpu.core_type<tc>, window_params = [{transform_indices = @transform_0, window_bounds = array<i64: 8, 8, 32>}, {pipeline_mode = #tpu.pipeline_mode<synchronous>, transform_indices = @transform_1, window_bounds = array<i64: 32, 32>}, {pipeline_mode = #tpu.pipeline_mode<synchronous>, transform_indices = @transform_2, window_bounds = array<i64: 1, 32>}, {transform_indices = @transform_3, window_bounds = array<i64: 8, 32>}]} {
    %c0 = arith.constant 0 : index
    %c0_0 = arith.constant 0 : index
    %c0_1 = arith.constant 0 : index
    %0 = vector.load %arg1[%c0, %c0_0, %c0_1] : memref<8x8x32xf32, #tpu.memory_space<vmem>>, vector<8x8x32xf32>
    %cst = arith.constant dense<0.000000e+00> : vector<8x32xf32>
    %1 = vector.multi_reduction <add>, %0, %cst [1] : vector<8x8x32xf32> to vector<8x32xf32>
    %c0_2 = arith.constant 0 : index
    %c0_3 = arith.constant 0 : index
    %2 = vector.load %arg2[%c0_2, %c0_3] : memref<32x32xf32, #tpu.memory_space<vmem>>, vector<32x32xf32>
    %cst_4 = arith.constant dense<0.000000e+00> : vector<8x32xf32>
    %3 = tpu.matmul %1, %2, %cst_4 {dimension_numbers = #tpu.dot_dimension_numbers<[1], [0], [0], [1], [0, 0, 1, 1], [], []>} : vector<8x32xf32>, vector<32x32xf32>, vector<8x32xf32> -> vector<8x32xf32>
    %cst_5 = arith.constant 1.250000e-01 : f32
    %4 = vector.broadcast %cst_5 : f32 to vector<8x32xf32>
    %5 = arith.mulf %3, %4 : vector<8x32xf32>
    %c0_6 = arith.constant 0 : index
    %c0_7 = arith.constant 0 : index
    %6 = vector.load %arg3[%c0_6, %c0_7] : memref<1x32xf32, #tpu.memory_space<vmem>>, vector<1x32xf32>
    %7 = vector.broadcast %6 : vector<1x32xf32> to vector<8x32xf32>
    %8 = arith.addf %5, %7 : vector<8x32xf32>
    %cst_8 = arith.constant 0.000000e+00 : f32
    %9 = vector.broadcast %cst_8 : f32 to vector<8x32xf32>
    %10 = arith.maximumf %8, %9 : vector<8x32xf32>
    %c0_9 = arith.constant 0 : index
    %c0_10 = arith.constant 0 : index
    %11 = vector.load %arg4[%c0_9, %c0_10] : memref<8x32xf32, #tpu.memory_space<vmem>>, vector<8x32xf32>
    tpu.vector_store %arg4[%c0_9, %c0_10], %10 {strides = array<i32>} : memref<8x32xf32, #tpu.memory_space<vmem>>, vector<8x32xf32>,
    return
  }
  func.func @transform_0(%arg0: i32) -> (i32, i32, i32) {
    %c0_i32 = arith.constant 0 : i32
    %c0_i32_0 = arith.constant 0 : i32
    %c0_i32_1 = arith.constant 0 : i32
    return %arg0, %c0_i32, %c0_i32_0 : i32, i32, i32
  }
  func.func @transform_1(%arg0: i32) -> (i32, i32) {
    %c0_i32 = arith.constant 0 : i32
    %c0_i32_0 = arith.constant 0 : i32
    %c0_i32_1 = arith.constant 0 : i32
    return %c0_i32, %c0_i32_0 : i32, i32
  }
  func.func @transform_2(%arg0: i32) -> (i32, i32) {
    %c0_i32 = arith.constant 0 : i32
    %c0_i32_0 = arith.constant 0 : i32
    %c0_i32_1 = arith.constant 0 : i32
    return %c0_i32, %c0_i32_0 : i32, i32
  }
  func.func @transform_3(%arg0: i32) -> (i32, i32) {
    %c0_i32 = arith.constant 0 : i32
    %c0_i32_0 = arith.constant 0 : i32
    return %arg0, %c0_i32 : i32, i32
  }
}

</mosaic_0001>

<llo_original>
// kernel: tpu_custom_call.1
$region0: #{tpu_custom_call.1}
  #allocation0 [shape = 'u32[]', space=smem, size = 0x4, offset = 0x4, fixed_abs, tag = 'smem constant byte address 0x4 - core index']
  #allocation1 [shape = 'u32[144,128]{1,0:T(1,128)}', space=vmem, size = 0x12000, scoped, tag = 'internal scratch']
  %s0 = inlined_call_operand.hbm [shape: f32[1,8,32], index: 0, kind: input, shape index: {}]
  %s1 = inlined_call_operand.hbm [shape: f32[32,32], index: 1, kind: input, shape index: {}]
  %s2 = inlined_call_operand.vmem [shape: f32[1,32], index: 2, kind: input, shape index: {}]
  %s3 = inlined_call_operand.hbm [shape: f32[1,32], index: 3, kind: output, shape index: {}]
  %s4 = sld [smem:[#allocation0]]
  $region30: #{tpu_custom_call.1} parent=0
    _
  %s6 = ssub.s32 1, %s4
  %s7 = scalar_select 0, %s6, %s4
  $region1: #{tpu_custom_call.1} parent=0
    #allocation2 [shape = 'u8[32768]{0}', space=vmem, size = 0x8000, scoped, tag = 'input window, operand 0, single buffered']
    #allocation3 [shape = 's32[1]{0}', space=sflag, size = 0x4, scoped, tag = 'scoped memory for tpu_custom_call.1']
    #allocation4 [shape = 's32[1]{0}', space=sflag, size = 0x4, scoped, tag = 'scoped memory for tpu_custom_call.1']
    #allocation5 [shape = 'u8[16384]{0}', space=vmem, size = 0x4000, scoped, tag = 'input window, operand 1, single buffered']
    #allocation6 [shape = 's32[1]{0}', space=sflag, size = 0x4, scoped, tag = 'scoped memory for tpu_custom_call.1']
    #allocation7 [shape = 'u8[4096]{0}', space=vmem, size = 0x1000, scoped, tag = 'output window, operand 0, single buffered']
    %8 = vsyncpa [#allocation3], 0
    %9 = vsyncpa [#allocation6], 0
    %10 = vsyncpa [#allocation4], 0
    // Predicated region
    $region2: #{tpu_custom_call.1} parent=1 // pred_check
      _
    $region3: #{tpu_custom_call.1} parent=1 // pred_check_branch
      %12 = sbr.rel (0) target = $region5
    $region4: #{tpu_custom_call.1} parent=1 // pred_region
      %s14 = ssub.s32 1024, 128
      %15 = vsyncadd [#allocation3], %s14
      %s16 = sshll.u32 [#allocation2], 4
      %s17 = int_to_ptr.vmem [resolvable:$true] %s16
      %22 = dma.hbm_to_vmem [thread:$0]  %s0, 128, %s17, [#allocation3], 128, 128, 8
    $region5: #{tpu_custom_call.1} parent=1 // pred_fallthru
      _
    // Predicated region
    $region6: #{tpu_custom_call.1} parent=1 // pred_check
      _
    $region7: #{tpu_custom_call.1} parent=1 // pred_check_branch
      %24 = sbr.rel (0) target = $region9
    $region8: #{tpu_custom_call.1} parent=1 // pred_region
      %s26 = ssub.s32 512, 512
      %27 = vsyncadd [#allocation6], %s26
      %s28 = sshll.u32 [#allocation5], 4
      %s29 = int_to_ptr.vmem [resolvable:$true] %s28
      %34 = dma.hbm_to_vmem [thread:$0]  %s1, 512, %s29, [#allocation6], 128, 128, 8
    $region9: #{tpu_custom_call.1} parent=1 // pred_fallthru
      _
    // Predicated region
    $region10: #{tpu_custom_call.1} parent=1 // pred_check
      _
    $region11: #{tpu_custom_call.1} parent=1 // pred_check_branch
      %36 = sbr.rel (0) target = $region13
    $region12: #{tpu_custom_call.1} parent=1 // pred_region
      _
    $region13: #{tpu_custom_call.1} parent=1 // pred_fallthru
      _
    // Predicated region
    $region14: #{tpu_custom_call.1} parent=1 // pred_check
      _
    $region15: #{tpu_custom_call.1} parent=1 // pred_check_branch
      %38 = sbr.rel (0) target = $region17
    $region16: #{tpu_custom_call.1} parent=1 // pred_region
      %39 = dma.done [#allocation3], 1024
    $region17: #{tpu_custom_call.1} parent=1 // pred_fallthru
      _
    // Predicated region
    $region18: #{tpu_custom_call.1} parent=1 // pred_check
      _
    $region19: #{tpu_custom_call.1} parent=1 // pred_check_branch
      %41 = sbr.rel (0) target = $region21
    $region20: #{tpu_custom_call.1} parent=1 // pred_region
      %42 = dma.done [#allocation6], 512
    $region21: #{tpu_custom_call.1} parent=1 // pred_fallthru
      _
    %v43 = vld [vmem:[#allocation2] sm:$0xff]
    %v44 = vld [vmem:[#allocation2 + $0x8] sm:$0xff]
    %v45 = vld [vmem:[#allocation2 + $0x10] sm:$0xff]
    %v46 = vld [vmem:[#allocation2 + $0x18] sm:$0xff]
    %v47 = vld [vmem:[#allocation2 + $0x20] sm:$0xff]
    %v48 = vld [vmem:[#allocation2 + $0x28] sm:$0xff]
    %v49 = vld [vmem:[#allocation2 + $0x30] sm:$0xff]
    %v50 = vld [vmem:[#allocation2 + $0x38] sm:$0xff]
    %vm51 = vcmask 261120
    %v52 = vsel %vm51, %v43, 0.0
    %v53 = vrot.slane %v52, 4
    %v54 = vadd.f32 %v52, %v53
    %v55 = vrot.slane %v54, 2
    %v56 = vadd.f32 %v54, %v55
    %v57 = vrot.slane %v56, 1
    %v58 = vadd.f32 %v56, %v57
    %v59 = vsel %vm51, %v44, 0.0
    %v60 = vrot.slane %v59, 4
    %v61 = vadd.f32 %v59, %v60
    %v62 = vrot.slane %v61, 2
    %v63 = vadd.f32 %v61, %v62
    %v64 = vrot.slane %v63, 1
    %v65 = vadd.f32 %v63, %v64
    %v66 = vsel %vm51, %v45, 0.0
    %v67 = vrot.slane %v66, 4
    %v68 = vadd.f32 %v66, %v67
    %v69 = vrot.slane %v68, 2
    %v70 = vadd.f32 %v68, %v69
    %v71 = vrot.slane %v70, 1
    %v72 = vadd.f32 %v70, %v71
    %v73 = vsel %vm51, %v46, 0.0
    %v74 = vrot.slane %v73, 4
    %v75 = vadd.f32 %v73, %v74
    %v76 = vrot.slane %v75, 2
    %v77 = vadd.f32 %v75, %v76
    %v78 = vrot.slane %v77, 1
    %v79 = vadd.f32 %v77, %v78
    %v80 = vsel %vm51, %v47, 0.0
    %v81 = vrot.slane %v80, 4
    %v82 = vadd.f32 %v80, %v81
    %v83 = vrot.slane %v82, 2
    %v84 = vadd.f32 %v82, %v83
    %v85 = vrot.slane %v84, 1
    %v86 = vadd.f32 %v84, %v85
    %v87 = vsel %vm51, %v48, 0.0
    %v88 = vrot.slane %v87, 4
    %v89 = vadd.f32 %v87, %v88
    %v90 = vrot.slane %v89, 2
    %v91 = vadd.f32 %v89, %v90
    %v92 = vrot.slane %v91, 1
    %v93 = vadd.f32 %v91, %v92
    %v94 = vsel %vm51, %v49, 0.0
    %v95 = vrot.slane %v94, 4
    %v96 = vadd.f32 %v94, %v95
    %v97 = vrot.slane %v96, 2
    %v98 = vadd.f32 %v96, %v97
    %v99 = vrot.slane %v98, 1
    %v100 = vadd.f32 %v98, %v99
    %v101 = vsel %vm51, %v50, 0.0
    %v102 = vrot.slane %v101, 4
    %v103 = vadd.f32 %v101, %v102
    %v104 = vrot.slane %v103, 2
    %v105 = vadd.f32 %v103, %v104
    %v106 = vrot.slane %v105, 1
    %v107 = vadd.f32 %v105, %v106
    %v108 = vld [vmem:[#allocation5] sm:$0xff]
    %v109 = vld [vmem:[#allocation5 + $0x8] sm:$0xff]
    %v110 = vld [vmem:[#allocation5 + $0x10] sm:$0xff]
    %v111 = vld [vmem:[#allocation5 + $0x18] sm:$0xff]
    %vm120 = vcmask 1041409
    %v121 = vsel %vm120, %v65, %v58
    %vm122 = vcmask 1042434
    %v123 = vsel %vm122, %v72, %v121
    %vm124 = vcmask 1043459
    %v125 = vsel %vm124, %v79, %v123
    %vm126 = vcmask 1044484
    %v127 = vsel %vm126, %v86, %v125
    %vm128 = vcmask 1045509
    %v129 = vsel %vm128, %v93, %v127
    %vm130 = vcmask 1046534
    %v131 = vsel %vm130, %v100, %v129
    %vm132 = vcmask 1047559
    %v133 = vsel %vm132, %v107, %v131
    %v134 = vsel %vm51, %v133, 0
    %136 = vmatprep.subr.mxu0 0.0
    %137 = vmatpush1.msra.mxu0 0.0
    %138 = vmatprep.subr.mxu0 0.0
    %139 = vmatpush1.msra.mxu0 0.0
    %140 = vmatprep.subr.mxu0 0.0
    %141 = vmatpush1.msra.mxu0 0.0
    %142 = vmatprep.subr.mxu0 0.0
    %143 = vmatpush1.msra.mxu0 0.0
    %144 = vmatprep.subr.mxu0 0.0
    %145 = vmatpush1.msra.mxu0 0.0
    %146 = vmatprep.subr.mxu0 0.0
    %147 = vmatpush1.msra.mxu0 0.0
    %148 = vmatprep.subr.mxu0 0.0
    %149 = vmatpush1.msra.mxu0 0.0
    %150 = vmatprep.subr.mxu0 0.0
    %151 = vmatpush1.msra.mxu0 0.0
    %152 = vmatprep.subr.mxu0 0.0
    %153 = vmatpush1.msra.mxu0 0.0
    %154 = vmatprep.subr.mxu0 0.0
    %155 = vmatpush1.msra.mxu0 0.0
    %156 = vmatprep.subr.mxu0 0.0
    %157 = vmatpush1.msra.mxu0 0.0
    %158 = vmatprep.subr.mxu0 0.0
    %159 = vmatpush1.msra.mxu0 0.0
    %160 = vmatprep.subr.mxu0 0.0
    %161 = vmatpush1.msra.mxu0 %v111
    %162 = vmatprep.subr.mxu0 0.0
    %163 = vmatpush1.msra.mxu0 %v110
    %164 = vmatprep.subr.mxu0 0.0
    %165 = vmatpush1.msra.mxu0 %v109
    %166 = vmatprep.subr.mxu0 0.0
    %167 = vmatpush1.msra.mxu0 %v108
    %168 = vmatprep.subr.mxu0 0.0
    %169 = vmatpush2.msra.mxu0 0.0
    %170 = vmatprep.subr.mxu0 0.0
    %171 = vmatpush2.msra.mxu0 0.0
    %172 = vmatprep.subr.mxu0 0.0
    %173 = vmatpush2.msra.mxu0 0.0
    %174 = vmatprep.subr.mxu0 0.0
    %175 = vmatpush2.msra.mxu0 0.0
    %176 = vmatprep.subr.mxu0 0.0
    %177 = vmatpush2.msra.mxu0 0.0
    %178 = vmatprep.subr.mxu0 0.0
    %179 = vmatpush2.msra.mxu0 0.0
    %180 = vmatprep.subr.mxu0 0.0
    %181 = vmatpush2.msra.mxu0 0.0
    %182 = vmatprep.subr.mxu0 0.0
    %183 = vmatpush2.msra.mxu0 0.0
    %184 = vmatprep.subr.mxu0 0.0
    %185 = vmatpush2.msra.mxu0 0.0
    %186 = vmatprep.subr.mxu0 0.0
    %187 = vmatpush2.msra.mxu0 0.0
    %188 = vmatprep.subr.mxu0 0.0
    %189 = vmatpush2.msra.mxu0 0.0
    %190 = vmatprep.subr.mxu0 0.0
    %191 = vmatpush2.msra.mxu0 0.0
    %192 = vmatprep.subr.mxu0 0.0
    %193 = vmatpush2.msra.mxu0 0.0
    %194 = vmatprep.subr.mxu0 0.0
    %195 = vmatpush2.msra.mxu0 0.0
    %196 = vmatprep.subr.mxu0 0.0
    %197 = vmatpush2.msra.mxu0 0.0
    %198 = vmatprep.subr.mxu0 0.0
    %199 = vmatpush2.msra.mxu0 0.0
    %200 = vmatprep.mubr.f32.mxu0 0.0
    %201 = vmatmul.mubr.f32.gmra.mxu0 %v134
    %v202 = vpop.f32.mrf.mxu0
    %v203 = vadd.f32 0.0, %v202
    %v204 = vpop.f32.mrf.mxu0
    %205 = vdwg.mxu0
    %v206 = vmul.f32 %v203, 0.125
    %v207 = vld [vmem:[%s2] sm:$0x1]
    %v209 = vlaneseq
    %v210 = vshrl.u32 %v209, 7
    %v211 = vsub.s32 0, %v210
    %v212 = vrot.slane %v207, %v211
    %v214 = vadd.f32 %v206, %v212
    %v215 = vmax.f32 %v214, 0.0
    %216 = vst.msk [vmem:[#allocation7] sm:$0xff] %vm51, %v215
    // Predicated region
    $region22: #{tpu_custom_call.1} parent=1 // pred_check
      _
    $region23: #{tpu_custom_call.1} parent=1 // pred_check_branch
      %218 = sbr.rel (0) target = $region25
    $region24: #{tpu_custom_call.1} parent=1 // pred_region
      %s220 = ssub.s32 128, 16
      %221 = vsyncadd [#allocation4], %s220
      %s222 = sshll.u32 [#allocation7], 4
      %s223 = int_to_ptr.vmem [resolvable:$true] %s222
      %228 = dma.vmem_to_hbm [thread:$0]  %s223, 16, %s3, [#allocation4], 16, 16, 1
    $region25: #{tpu_custom_call.1} parent=1 // pred_fallthru
      _
    // Predicated region
    $region26: #{tpu_custom_call.1} parent=1 // pred_check
      _
    $region27: #{tpu_custom_call.1} parent=1 // pred_check_branch
      %230 = sbr.rel (0) target = $region29
    $region28: #{tpu_custom_call.1} parent=1 // pred_region
      %231 = dma.done [#allocation4], 128
    $region29: #{tpu_custom_call.1} parent=1 // pred_fallthru
      _
    %232 = vsyncpa [#allocation3], 1
    %233 = vsyncpa [#allocation6], 1
    %234 = vsyncpa [#allocation4], 1

</llo_original>
